<compile_context>
chip_gen: v6e
topology: v6e:2x2x1
jax: 0.10.0
libtpu: 0.0.40
codegen_flags: <defaults>
</compile_context>

<pallas_src>
import functools

import jax
import jax.numpy as jnp
from jax.experimental import pallas as pl
from jax.experimental.pallas import tpu as pltpu

ACTION_SPACE = 8                        # consts.action_space (synthetic choice)
IN_DIM = ACTION_SPACE * ACTION_SPACE    # 64
H1 = 64
H2 = 32
OUT_DIM = ACTION_SPACE                  # 8

# Lane-dense padded hidden widths (128-lane vregs).
H1_PAD = 128
H2_PAD = 128

DEFAULT_TILE_B = 1024                   # bigger tiles -> fewer grid steps


def _round_up(x, m):
    return ((x + m - 1) // m) * m


def _choose_tile_b(batch, tile_cap):
    """Pick the batch tile: multiple of 8, <= tile_cap, and (for B > 8) at
    least two grid steps so both v7x TensorCores get work."""
    if batch <= 8:
        return max(batch, 1)            # single clipped block, row dim == full dim
    half = -(-batch // 2)               # ceil(B / 2)
    return max(8, min(tile_cap, _round_up(half, 8)))


def _behavioral_kernel(x_ref, w1_ref, b1_ref, w2_ref, b2_ref, w3_ref, b3_ref,
                       o_ref):
    # x_ref: (TB, IN_DIM)
    # w1: (IN_DIM, H1_PAD)   b1: (1, H1_PAD)     -- cols >= H1 are zero
    # w2: (H1_PAD, H2_PAD)   b2: (1, H2_PAD)     -- rows >= H1 / cols >= H2 zero
    # w3: (H2_PAD, OUT_DIM)  b3: (1, OUT_DIM)    -- rows >= H2 are zero
    # o_ref: (TB, OUT_DIM)
    x = x_ref[...]

    # Linear 1 + ReLU (MXU matmul, f32 accumulation; bias/ReLU on VPU).
    h1 = jnp.dot(x, w1_ref[...], preferred_element_type=jnp.float32)
    h1 = jnp.maximum(h1 + b1_ref[...], 0.0)

    # Linear 2 + ReLU. Zero-padded columns of h1 hit zero rows of w2, so the
    # padding is mathematically inert.
    h2 = jnp.dot(h1.astype(w2_ref.dtype), w2_ref[...],
                 preferred_element_type=jnp.float32)
    h2 = jnp.maximum(h2 + b2_ref[...], 0.0)

    # Linear 3 (no activation). Narrow (OUT_DIM-lane) store.
    beta = jnp.dot(h2.astype(w3_ref.dtype), w3_ref[...],
                   preferred_element_type=jnp.float32)
    beta = beta + b3_ref[...]

    o_ref[...] = beta.astype(o_ref.dtype)


def prepare_params(params, *, use_bf16=False):
    """One-time weight prep: zero-pad to lane-dense shapes, optional bf16 cast.

    `params` holds torch-equivalent (in_features, out_features) weights so the
    kernel computes x @ W + b, identical to nn.Linear.
    Biases stay f32 (they are added to f32 accumulators).
    """
    wdt = jnp.bfloat16 if use_bf16 else jnp.float32
    w1 = jnp.zeros((IN_DIM, H1_PAD), jnp.float32).at[:, :H1].set(
        params["w1"]).astype(wdt)
    b1 = jnp.zeros((1, H1_PAD), jnp.float32).at[:, :H1].set(
        params["b1"].reshape(1, H1))
    w2 = jnp.zeros((H1_PAD, H2_PAD), jnp.float32).at[:H1, :H2].set(
        params["w2"]).astype(wdt)
    b2 = jnp.zeros((1, H2_PAD), jnp.float32).at[:, :H2].set(
        params["b2"].reshape(1, H2))
    w3 = jnp.zeros((H2_PAD, OUT_DIM), jnp.float32).at[:H2, :].set(
        params["w3"]).astype(wdt)
    b3 = params["b3"].reshape(1, OUT_DIM).astype(jnp.float32)
    return {"w1": w1, "b1": b1, "w2": w2, "b2": b2, "w3": w3, "b3": b3}


def behavioral_net_forward(s, prepared, *, tile_b=DEFAULT_TILE_B):
    """s: (B, A, A) or (B, A*A); prepared: output of prepare_params()."""
    compute_dtype = prepared["w1"].dtype
    # Cast directly to the compute dtype (no f32 round trip for bf16).
    x = s.reshape(-1, IN_DIM).astype(compute_dtype)
    B = x.shape[0]

    tb = _choose_tile_b(B, tile_b)
    grid = (pl.cdiv(B, tb),)

    # Batch-tiled x / out; weights & biases are whole-array blocks whose block
    # index never changes, so Pallas does not re-DMA them each step.
    x_spec = pl.BlockSpec((tb, IN_DIM), lambda i: (i, 0))
    w1_spec = pl.BlockSpec((IN_DIM, H1_PAD), lambda i: (0, 0))
    b1_spec = pl.BlockSpec((1, H1_PAD), lambda i: (0, 0))
    w2_spec = pl.BlockSpec((H1_PAD, H2_PAD), lambda i: (0, 0))
    b2_spec = pl.BlockSpec((1, H2_PAD), lambda i: (0, 0))
    w3_spec = pl.BlockSpec((H2_PAD, OUT_DIM), lambda i: (0, 0))
    b3_spec = pl.BlockSpec((1, OUT_DIM), lambda i: (0, 0))
    out_spec = pl.BlockSpec((tb, OUT_DIM), lambda i: (i, 0))

    itemsize = jnp.dtype(compute_dtype).itemsize
    weight_bytes = (prepared["w1"].size + prepared["w2"].size
                    + prepared["w3"].size) * itemsize \
        + (prepared["b1"].size + prepared["b2"].size + prepared["b3"].size) * 4
    cost = pl.CostEstimate(
        flops=2 * B * (IN_DIM * H1_PAD + H1_PAD * H2_PAD + H2_PAD * OUT_DIM),
        transcendentals=0,
        bytes_accessed=B * IN_DIM * itemsize + B * OUT_DIM * 4 + weight_bytes,
    )

    return pl.pallas_call(
        _behavioral_kernel,
        out_shape=jax.ShapeDtypeStruct((B, OUT_DIM), jnp.float32),
        grid=grid,
        in_specs=[x_spec, w1_spec, b1_spec, w2_spec, b2_spec, w3_spec, b3_spec],
        out_specs=out_spec,
        compiler_params=pltpu.CompilerParams(
            dimension_semantics=("parallel",),
        ),
        cost_estimate=cost,
    )(x, prepared["w1"], prepared["b1"], prepared["w2"], prepared["b2"],
      prepared["w3"], prepared["b3"])


def init_params(key):
    """Deterministic xavier-uniform-like init (matches module.reset() intent)."""
    def xavier(k, fan_in, fan_out):
        limit = (6.0 / (fan_in + fan_out)) ** 0.5
        return jax.random.uniform(k, (fan_in, fan_out), jnp.float32,
                                  minval=-limit, maxval=limit)

    k1, k2, k3 = jax.random.split(key, 3)
    return {
        "w1": xavier(k1, IN_DIM, H1),
        "b1": jnp.zeros((H1,), jnp.float32),
        "w2": xavier(k2, H1, H2),
        "b2": jnp.zeros((H2,), jnp.float32),
        "w3": xavier(k3, H2, OUT_DIM),
        "b3": jnp.zeros((OUT_DIM,), jnp.float32),
    }


def _reference_forward(s, params):
    x = s.reshape(-1, IN_DIM).astype(jnp.float32)
    h = jnp.maximum(x @ params["w1"] + params["b1"], 0.0)
    h = jnp.maximum(h @ params["w2"] + params["b2"], 0.0)
    return h @ params["w3"] + params["b3"]


if __name__ == "__main__":
    key = jax.random.PRNGKey(0)
    k_param, k_input = jax.random.split(key)

    params = init_params(k_param)
    # Small batch of "state" inputs, shape (B, A, A) as the forward implies.
    s = jax.random.normal(k_input, (2, ACTION_SPACE, ACTION_SPACE), jnp.float32)

    ref = _reference_forward(s, params)
    fwd = jax.jit(functools.partial(behavioral_net_forward,
                                    tile_b=DEFAULT_TILE_B))

    # f32 path (default; exact vs the f32 reference).
    prep_f32 = prepare_params(params, use_bf16=False)
    beta = jax.block_until_ready(fwd(s, prep_f32))
    assert beta.shape == (2, OUT_DIM)
    assert jnp.allclose(beta, ref, atol=1e-5, rtol=1e-5)

    # bf16 path (recommended on v6e/v7x: halves input/weight DMA, f32 accum).
    prep_bf16 = prepare_params(params, use_bf16=True)
    beta_bf16 = jax.block_until_ready(fwd(s, prep_bf16))
    assert beta_bf16.shape == (2, OUT_DIM)
    assert jnp.allclose(beta_bf16, ref, atol=1e-1, rtol=1e-1)

    print("KERNEL_OK")
</pallas_src>

<mosaic_0001>
module attributes {stable_mosaic.version = 11 : i64} {
  func.func @_behavioral_kernel(%arg0: i32, %arg1: memref<2x64xf32, #tpu.memory_space<vmem>>, %arg2: memref<64x128xf32, #tpu.memory_space<vmem>>, %arg3: memref<1x128xf32, #tpu.memory_space<vmem>>, %arg4: memref<128x128xf32, #tpu.memory_space<vmem>>, %arg5: memref<1x128xf32, #tpu.memory_space<vmem>>, %arg6: memref<128x8xf32, #tpu.memory_space<vmem>>, %arg7: memref<1x8xf32, #tpu.memory_space<vmem>>, %arg8: memref<2x8xf32, #tpu.memory_space<vmem>>) attributes {dimension_semantics = [#tpu.dimension_semantics<parallel>], iteration_bounds = array<i64: 1>, scalar_prefetch = 0 : i64, scratch_operands = 0 : i64, tpu.core_type = #tpu.core_type<tc>, window_params = [{transform_indices = @transform_0, window_bounds = array<i64: 2, 64>}, {pipeline_mode = #tpu.pipeline_mode<synchronous>, transform_indices = @transform_1, window_bounds = array<i64: 64, 128>}, {pipeline_mode = #tpu.pipeline_mode<synchronous>, transform_indices = @transform_2, window_bounds = array<i64: 1, 128>}, {pipeline_mode = #tpu.pipeline_mode<synchronous>, transform_indices = @transform_3, window_bounds = array<i64: 128, 128>}, {pipeline_mode = #tpu.pipeline_mode<synchronous>, transform_indices = @transform_4, window_bounds = array<i64: 1, 128>}, {pipeline_mode = #tpu.pipeline_mode<synchronous>, transform_indices = @transform_5, window_bounds = array<i64: 128, 8>}, {pipeline_mode = #tpu.pipeline_mode<synchronous>, transform_indices = @transform_6, window_bounds = array<i64: 1, 8>}, {transform_indices = @transform_7, window_bounds = array<i64: 2, 8>}]} {
    %c0 = arith.constant 0 : index
    %c0_0 = arith.constant 0 : index
    %0 = vector.load %arg1[%c0, %c0_0] : memref<2x64xf32, #tpu.memory_space<vmem>>, vector<2x64xf32>
    %c0_1 = arith.constant 0 : index
    %c0_2 = arith.constant 0 : index
    %1 = vector.load %arg2[%c0_1, %c0_2] : memref<64x128xf32, #tpu.memory_space<vmem>>, vector<64x128xf32>
    %cst = arith.constant dense<0.000000e+00> : vector<2x128xf32>
    %2 = tpu.matmul %0, %1, %cst {dimension_numbers = #tpu.dot_dimension_numbers<[1], [0], [0], [1], [0, 0, 1, 1], [], []>} : vector<2x64xf32>, vector<64x128xf32>, vector<2x128xf32> -> vector<2x128xf32>
    %c0_3 = arith.constant 0 : index
    %c0_4 = arith.constant 0 : index
    %3 = vector.load %arg3[%c0_3, %c0_4] : memref<1x128xf32, #tpu.memory_space<vmem>>, vector<1x128xf32>
    %4 = vector.broadcast %3 : vector<1x128xf32> to vector<2x128xf32>
    %5 = arith.addf %2, %4 : vector<2x128xf32>
    %cst_5 = arith.constant 0.000000e+00 : f32
    %6 = vector.broadcast %cst_5 : f32 to vector<2x128xf32>
    %7 = arith.maximumf %5, %6 : vector<2x128xf32>
    %c0_6 = arith.constant 0 : index
    %c0_7 = arith.constant 0 : index
    %8 = vector.load %arg4[%c0_6, %c0_7] : memref<128x128xf32, #tpu.memory_space<vmem>>, vector<128x128xf32>
    %cst_8 = arith.constant dense<0.000000e+00> : vector<2x128xf32>
    %9 = tpu.matmul %7, %8, %cst_8 {dimension_numbers = #tpu.dot_dimension_numbers<[1], [0], [0], [1], [0, 0, 1, 1], [], []>} : vector<2x128xf32>, vector<128x128xf32>, vector<2x128xf32> -> vector<2x128xf32>
    %c0_9 = arith.constant 0 : index
    %c0_10 = arith.constant 0 : index
    %10 = vector.load %arg5[%c0_9, %c0_10] : memref<1x128xf32, #tpu.memory_space<vmem>>, vector<1x128xf32>
    %11 = vector.broadcast %10 : vector<1x128xf32> to vector<2x128xf32>
    %12 = arith.addf %9, %11 : vector<2x128xf32>
    %cst_11 = arith.constant 0.000000e+00 : f32
    %13 = vector.broadcast %cst_11 : f32 to vector<2x128xf32>
    %14 = arith.maximumf %12, %13 : vector<2x128xf32>
    %c0_12 = arith.constant 0 : index
    %c0_13 = arith.constant 0 : index
    %15 = vector.load %arg6[%c0_12, %c0_13] : memref<128x8xf32, #tpu.memory_space<vmem>>, vector<128x8xf32>
    %cst_14 = arith.constant dense<0.000000e+00> : vector<2x8xf32>
    %16 = tpu.matmul %14, %15, %cst_14 {dimension_numbers = #tpu.dot_dimension_numbers<[1], [0], [0], [1], [0, 0, 1, 1], [], []>} : vector<2x128xf32>, vector<128x8xf32>, vector<2x8xf32> -> vector<2x8xf32>
    %c0_15 = arith.constant 0 : index
    %c0_16 = arith.constant 0 : index
    %17 = vector.load %arg7[%c0_15, %c0_16] : memref<1x8xf32, #tpu.memory_space<vmem>>, vector<1x8xf32>
    %18 = vector.broadcast %17 : vector<1x8xf32> to vector<2x8xf32>
    %19 = arith.addf %16, %18 : vector<2x8xf32>
    %c0_17 = arith.constant 0 : index
    %c0_18 = arith.constant 0 : index
    %20 = vector.load %arg8[%c0_17, %c0_18] : memref<2x8xf32, #tpu.memory_space<vmem>>, vector<2x8xf32>
    tpu.vector_store %arg8[%c0_17, %c0_18], %19 {strides = array<i32>} : memref<2x8xf32, #tpu.memory_space<vmem>>, vector<2x8xf32>,
    return
  }
  func.func @transform_0(%arg0: i32) -> (i32, i32) {
    %c0_i32 = arith.constant 0 : i32
    %c0_i32_0 = arith.constant 0 : i32
    return %arg0, %c0_i32 : i32, i32
  }
  func.func @transform_1(%arg0: i32) -> (i32, i32) {
    %c0_i32 = arith.constant 0 : i32
    %c0_i32_0 = arith.constant 0 : i32
    %c0_i32_1 = arith.constant 0 : i32
    return %c0_i32, %c0_i32_0 : i32, i32
  }
  func.func @transform_2(%arg0: i32) -> (i32, i32) {
    %c0_i32 = arith.constant 0 : i32
    %c0_i32_0 = arith.constant 0 : i32
    %c0_i32_1 = arith.constant 0 : i32
    return %c0_i32, %c0_i32_0 : i32, i32
  }
  func.func @transform_3(%arg0: i32) -> (i32, i32) {
    %c0_i32 = arith.constant 0 : i32
    %c0_i32_0 = arith.constant 0 : i32
    %c0_i32_1 = arith.constant 0 : i32
    return %c0_i32, %c0_i32_0 : i32, i32
  }
  func.func @transform_4(%arg0: i32) -> (i32, i32) {
    %c0_i32 = arith.constant 0 : i32
    %c0_i32_0 = arith.constant 0 : i32
    %c0_i32_1 = arith.constant 0 : i32
    return %c0_i32, %c0_i32_0 : i32, i32
  }
  func.func @transform_5(%arg0: i32) -> (i32, i32) {
    %c0_i32 = arith.constant 0 : i32
    %c0_i32_0 = arith.constant 0 : i32
    %c0_i32_1 = arith.constant 0 : i32
    return %c0_i32, %c0_i32_0 : i32, i32
  }
  func.func @transform_6(%arg0: i32) -> (i32, i32) {
    %c0_i32 = arith.constant 0 : i32
    %c0_i32_0 = arith.constant 0 : i32
    %c0_i32_1 = arith.constant 0 : i32
    return %c0_i32, %c0_i32_0 : i32, i32
  }
  func.func @transform_7(%arg0: i32) -> (i32, i32) {
    %c0_i32 = arith.constant 0 : i32
    %c0_i32_0 = arith.constant 0 : i32
    return %arg0, %c0_i32 : i32, i32
  }
}

</mosaic_0001>

<llo_original>
// kernel: behavioral_net_forward.1
$region0: #{behavioral_net_forward.1}
  #allocation0 [shape = 'u32[]', space=smem, size = 0x4, offset = 0x4, fixed_abs, tag = 'smem constant byte address 0x4 - core index']
  #allocation1 [shape = 'u32[144,128]{1,0:T(1,128)}', space=vmem, size = 0x12000, scoped, tag = 'internal scratch']
  %s0 = inlined_call_operand.vmem [shape: f32[2,64], index: 0, kind: input, shape index: {}]
  %s1 = inlined_call_operand.hbm [shape: f32[64,128], index: 1, kind: input, shape index: {}]
  %s2 = inlined_call_operand.vmem [shape: f32[1,128], index: 2, kind: input, shape index: {}]
  %s3 = inlined_call_operand.vmem [shape: f32[128,128], index: 3, kind: input, shape index: {}]
  %s4 = inlined_call_operand.vmem [shape: f32[1,128], index: 4, kind: input, shape index: {}]
  %s5 = inlined_call_operand.vmem [shape: f32[128,8], index: 5, kind: input, shape index: {}]
  %s6 = inlined_call_operand.vmem [shape: f32[1,8], index: 6, kind: input, shape index: {}]
  %s7 = inlined_call_operand.hbm [shape: f32[2,8], index: 7, kind: output, shape index: {}]
  %s8 = sld [smem:[#allocation0]]
  $region42: #{behavioral_net_forward.1} parent=0
    _
  %s10 = ssub.s32 1, %s8
  %s11 = scalar_select 0, %s10, %s8
  $region1: #{behavioral_net_forward.1} parent=0
    #allocation2 [shape = 'u8[32768]{0}', space=vmem, size = 0x8000, scoped, tag = 'input window, operand 1, single buffered']
    #allocation3 [shape = 's32[1]{0}', space=sflag, size = 0x4, scoped, tag = 'scoped memory for behavioral_net_forward.1']
    #allocation4 [shape = 's32[1]{0}', space=sflag, size = 0x4, scoped, tag = 'scoped memory for behavioral_net_forward.1']
    #allocation5 [shape = 'u8[1024]{0}', space=vmem, size = 0x400, scoped, tag = 'output window, operand 0, single buffered']
    %12 = vsyncpa [#allocation3], 0
    %13 = vsyncpa [#allocation4], 0
    // Predicated region
    $region2: #{behavioral_net_forward.1} parent=1 // pred_check
      _
    $region3: #{behavioral_net_forward.1} parent=1 // pred_check_branch
      %15 = sbr.rel (0) target = $region5
    $region4: #{behavioral_net_forward.1} parent=1 // pred_region
      _
    $region5: #{behavioral_net_forward.1} parent=1 // pred_fallthru
      _
    // Predicated region
    $region6: #{behavioral_net_forward.1} parent=1 // pred_check
      _
    $region7: #{behavioral_net_forward.1} parent=1 // pred_check_branch
      %17 = sbr.rel (0) target = $region9
    $region8: #{behavioral_net_forward.1} parent=1 // pred_region
      %s19 = ssub.s32 1024, 1024
      %20 = vsyncadd [#allocation3], %s19
      %s21 = sshll.u32 [#allocation2], 4
      %s22 = int_to_ptr.vmem [resolvable:$true] %s21
      %27 = dma.hbm_to_vmem [thread:$0]  %s1, 1024, %s22, [#allocation3], 128, 128, 8
    $region9: #{behavioral_net_forward.1} parent=1 // pred_fallthru
      _
    // Predicated region
    $region10: #{behavioral_net_forward.1} parent=1 // pred_check
      _
    $region11: #{behavioral_net_forward.1} parent=1 // pred_check_branch
      %29 = sbr.rel (0) target = $region13
    $region12: #{behavioral_net_forward.1} parent=1 // pred_region
      _
    $region13: #{behavioral_net_forward.1} parent=1 // pred_fallthru
      _
    // Predicated region
    $region14: #{behavioral_net_forward.1} parent=1 // pred_check
      _
    $region15: #{behavioral_net_forward.1} parent=1 // pred_check_branch
      %31 = sbr.rel (0) target = $region17
    $region16: #{behavioral_net_forward.1} parent=1 // pred_region
      _
    $region17: #{behavioral_net_forward.1} parent=1 // pred_fallthru
      _
    // Predicated region
    $region18: #{behavioral_net_forward.1} parent=1 // pred_check
      _
    $region19: #{behavioral_net_forward.1} parent=1 // pred_check_branch
      %33 = sbr.rel (0) target = $region21
    $region20: #{behavioral_net_forward.1} parent=1 // pred_region
      _
    $region21: #{behavioral_net_forward.1} parent=1 // pred_fallthru
      _
    // Predicated region
    $region22: #{behavioral_net_forward.1} parent=1 // pred_check
      _
    $region23: #{behavioral_net_forward.1} parent=1 // pred_check_branch
      %35 = sbr.rel (0) target = $region25
    $region24: #{behavioral_net_forward.1} parent=1 // pred_region
      _
    $region25: #{behavioral_net_forward.1} parent=1 // pred_fallthru
      _
    // Predicated region
    $region26: #{behavioral_net_forward.1} parent=1 // pred_check
      _
    $region27: #{behavioral_net_forward.1} parent=1 // pred_check_branch
      %37 = sbr.rel (0) target = $region29
    $region28: #{behavioral_net_forward.1} parent=1 // pred_region
      _
    $region29: #{behavioral_net_forward.1} parent=1 // pred_fallthru
      _
    // Predicated region
    $region30: #{behavioral_net_forward.1} parent=1 // pred_check
      _
    $region31: #{behavioral_net_forward.1} parent=1 // pred_check_branch
      %39 = sbr.rel (0) target = $region33
    $region32: #{behavioral_net_forward.1} parent=1 // pred_region
      %40 = dma.done [#allocation3], 1024
    $region33: #{behavioral_net_forward.1} parent=1 // pred_fallthru
      _
    %v41 = vld [vmem:[%s0] sm:$0x3]
    %v42 = vld [vmem:[#allocation2] sm:$0xff]
    %v43 = vld [vmem:[#allocation2 + $0x8] sm:$0xff]
    %v44 = vld [vmem:[#allocation2 + $0x10] sm:$0xff]
    %v45 = vld [vmem:[#allocation2 + $0x18] sm:$0xff]
    %v46 = vld [vmem:[#allocation2 + $0x20] sm:$0xff]
    %v47 = vld [vmem:[#allocation2 + $0x28] sm:$0xff]
    %v48 = vld [vmem:[#allocation2 + $0x30] sm:$0xff]
    %v49 = vld [vmem:[#allocation2 + $0x38] sm:$0xff]
    %v50 = vld [vmem:[%s2] sm:$0x1]
    %v52 = vlaneseq
    %v53 = vshrl.u32 %v52, 7
    %v54 = vsub.s32 0, %v53
    %v55 = vrot.slane %v50, %v54
    %vm57 = vcmask 523264
    %v59 = vsel %vm57, %v41, 0
    %61 = vmatprep.subr.mxu0 0.0
    %62 = vmatpush1.msra.mxu0 0.0
    %63 = vmatprep.subr.mxu0 0.0
    %64 = vmatpush1.msra.mxu0 0.0
    %65 = vmatprep.subr.mxu0 0.0
    %66 = vmatpush1.msra.mxu0 0.0
    %67 = vmatprep.subr.mxu0 0.0
    %68 = vmatpush1.msra.mxu0 0.0
    %69 = vmatprep.subr.mxu0 0.0
    %70 = vmatpush1.msra.mxu0 0.0
    %71 = vmatprep.subr.mxu0 0.0
    %72 = vmatpush1.msra.mxu0 0.0
    %73 = vmatprep.subr.mxu0 0.0
    %74 = vmatpush1.msra.mxu0 0.0
    %75 = vmatprep.subr.mxu0 0.0
    %76 = vmatpush1.msra.mxu0 0.0
    %77 = vmatprep.subr.mxu0 0.0
    %78 = vmatpush1.msra.mxu0 %v49
    %79 = vmatprep.subr.mxu0 0.0
    %80 = vmatpush1.msra.mxu0 %v48
    %81 = vmatprep.subr.mxu0 0.0
    %82 = vmatpush1.msra.mxu0 %v47
    %83 = vmatprep.subr.mxu0 0.0
    %84 = vmatpush1.msra.mxu0 %v46
    %85 = vmatprep.subr.mxu0 0.0
    %86 = vmatpush1.msra.mxu0 %v45
    %87 = vmatprep.subr.mxu0 0.0
    %88 = vmatpush1.msra.mxu0 %v44
    %89 = vmatprep.subr.mxu0 0.0
    %90 = vmatpush1.msra.mxu0 %v43
    %91 = vmatprep.subr.mxu0 0.0
    %92 = vmatpush1.msra.mxu0 %v42
    %93 = vmatprep.subr.mxu0 0.0
    %94 = vmatpush2.msra.mxu0 0.0
    %95 = vmatprep.subr.mxu0 0.0
    %96 = vmatpush2.msra.mxu0 0.0
    %97 = vmatprep.subr.mxu0 0.0
    %98 = vmatpush2.msra.mxu0 0.0
    %99 = vmatprep.subr.mxu0 0.0
    %100 = vmatpush2.msra.mxu0 0.0
    %101 = vmatprep.subr.mxu0 0.0
    %102 = vmatpush2.msra.mxu0 0.0
    %103 = vmatprep.subr.mxu0 0.0
    %104 = vmatpush2.msra.mxu0 0.0
    %105 = vmatprep.subr.mxu0 0.0
    %106 = vmatpush2.msra.mxu0 0.0
    %107 = vmatprep.subr.mxu0 0.0
    %108 = vmatpush2.msra.mxu0 0.0
    %109 = vmatprep.subr.mxu0 0.0
    %110 = vmatpush2.msra.mxu0 0.0
    %111 = vmatprep.subr.mxu0 0.0
    %112 = vmatpush2.msra.mxu0 0.0
    %113 = vmatprep.subr.mxu0 0.0
    %114 = vmatpush2.msra.mxu0 0.0
    %115 = vmatprep.subr.mxu0 0.0
    %116 = vmatpush2.msra.mxu0 0.0
    %117 = vmatprep.subr.mxu0 0.0
    %118 = vmatpush2.msra.mxu0 0.0
    %119 = vmatprep.subr.mxu0 0.0
    %120 = vmatpush2.msra.mxu0 0.0
    %121 = vmatprep.subr.mxu0 0.0
    %122 = vmatpush2.msra.mxu0 0.0
    %123 = vmatprep.subr.mxu0 0.0
    %124 = vmatpush2.msra.mxu0 0.0
    %125 = vmatprep.mubr.f32.mxu0 0.0
    %126 = vmatmul.mubr.f32.gmra.mxu0 %v59
    %v127 = vpop.f32.mrf.mxu0
    %v128 = vadd.f32 %v55, %v127
    %v129 = vpop.f32.mrf.mxu0
    %130 = vdwg.mxu0
    %v131 = vmax.f32 %v128, 0.0
    %v132 = vld [vmem:[%s3] sm:$0xff]
    %v133 = vld [vmem:[%s3 + $0x8] sm:$0xff]
    %v134 = vld [vmem:[%s3 + $0x10] sm:$0xff]
    %v135 = vld [vmem:[%s3 + $0x18] sm:$0xff]
    %v136 = vld [vmem:[%s3 + $0x20] sm:$0xff]
    %v137 = vld [vmem:[%s3 + $0x28] sm:$0xff]
    %v138 = vld [vmem:[%s3 + $0x30] sm:$0xff]
    %v139 = vld [vmem:[%s3 + $0x38] sm:$0xff]
    %v140 = vld [vmem:[%s3 + $0x40] sm:$0xff]
    %v141 = vld [vmem:[%s3 + $0x48] sm:$0xff]
    %v142 = vld [vmem:[%s3 + $0x50] sm:$0xff]
    %v143 = vld [vmem:[%s3 + $0x58] sm:$0xff]
    %v144 = vld [vmem:[%s3 + $0x60] sm:$0xff]
    %v145 = vld [vmem:[%s3 + $0x68] sm:$0xff]
    %v146 = vld [vmem:[%s3 + $0x70] sm:$0xff]
    %v147 = vld [vmem:[%s3 + $0x78] sm:$0xff]
    %v148 = vld [vmem:[%s4] sm:$0x1]
    %v150 = vlaneseq
    %v151 = vshrl.u32 %v150, 7
    %v152 = vsub.s32 0, %v151
    %v153 = vrot.slane %v148, %v152
    %155 = vmatprep.subr.mxu0 0.0
    %156 = vmatpush1.msra.mxu0 %v147
    %157 = vmatprep.subr.mxu0 0.0
    %158 = vmatpush1.msra.mxu0 %v146
    %159 = vmatprep.subr.mxu0 0.0
    %160 = vmatpush1.msra.mxu0 %v145
    %161 = vmatprep.subr.mxu0 0.0
    %162 = vmatpush1.msra.mxu0 %v144
    %163 = vmatprep.subr.mxu0 0.0
    %164 = vmatpush1.msra.mxu0 %v143
    %165 = vmatprep.subr.mxu0 0.0
    %166 = vmatpush1.msra.mxu0 %v142
    %167 = vmatprep.subr.mxu0 0.0
    %168 = vmatpush1.msra.mxu0 %v141
    %169 = vmatprep.subr.mxu0 0.0
    %170 = vmatpush1.msra.mxu0 %v140
    %171 = vmatprep.subr.mxu0 0.0
    %172 = vmatpush1.msra.mxu0 %v139
    %173 = vmatprep.subr.mxu0 0.0
    %174 = vmatpush1.msra.mxu0 %v138
    %175 = vmatprep.subr.mxu0 0.0
    %176 = vmatpush1.msra.mxu0 %v137
    %177 = vmatprep.subr.mxu0 0.0
    %178 = vmatpush1.msra.mxu0 %v136
    %179 = vmatprep.subr.mxu0 0.0
    %180 = vmatpush1.msra.mxu0 %v135
    %181 = vmatprep.subr.mxu0 0.0
    %182 = vmatpush1.msra.mxu0 %v134
    %183 = vmatprep.subr.mxu0 0.0
    %184 = vmatpush1.msra.mxu0 %v133
    %185 = vmatprep.subr.mxu0 0.0
    %186 = vmatpush1.msra.mxu0 %v132
    %187 = vmatprep.subr.mxu0 0.0
    %188 = vmatpush2.msra.mxu0 0.0
    %189 = vmatprep.subr.mxu0 0.0
    %190 = vmatpush2.msra.mxu0 0.0
    %191 = vmatprep.subr.mxu0 0.0
    %192 = vmatpush2.msra.mxu0 0.0
    %193 = vmatprep.subr.mxu0 0.0
    %194 = vmatpush2.msra.mxu0 0.0
    %195 = vmatprep.subr.mxu0 0.0
    %196 = vmatpush2.msra.mxu0 0.0
    %197 = vmatprep.subr.mxu0 0.0
    %198 = vmatpush2.msra.mxu0 0.0
    %199 = vmatprep.subr.mxu0 0.0
    %200 = vmatpush2.msra.mxu0 0.0
    %201 = vmatprep.subr.mxu0 0.0
    %202 = vmatpush2.msra.mxu0 0.0
    %203 = vmatprep.subr.mxu0 0.0
    %204 = vmatpush2.msra.mxu0 0.0
    %205 = vmatprep.subr.mxu0 0.0
    %206 = vmatpush2.msra.mxu0 0.0
    %207 = vmatprep.subr.mxu0 0.0
    %208 = vmatpush2.msra.mxu0 0.0
    %209 = vmatprep.subr.mxu0 0.0
    %210 = vmatpush2.msra.mxu0 0.0
    %211 = vmatprep.subr.mxu0 0.0
    %212 = vmatpush2.msra.mxu0 0.0
    %213 = vmatprep.subr.mxu0 0.0
    %214 = vmatpush2.msra.mxu0 0.0
    %215 = vmatprep.subr.mxu0 0.0
    %216 = vmatpush2.msra.mxu0 0.0
    %217 = vmatprep.subr.mxu0 0.0
    %218 = vmatpush2.msra.mxu0 0.0
    %219 = vmatprep.mubr.f32.mxu0 0.0
    %220 = vmatmul.mubr.f32.gmra.mxu0 %v131
    %v221 = vpop.f32.mrf.mxu0
    %v222 = vadd.f32 %v153, %v221
    %v223 = vpop.f32.mrf.mxu0
    %224 = vdwg.mxu0
    %v225 = vmax.f32 %v222, 0.0
    %v226 = vld [vmem:[%s5] sm:$0xff]
    %v227 = vld [vmem:[%s5 + $0x8] sm:$0xff]
    %v228 = vld [vmem:[%s5 + $0x10] sm:$0xff]
    %v229 = vld [vmem:[%s5 + $0x18] sm:$0xff]
    %v230 = vld [vmem:[%s5 + $0x20] sm:$0xff]
    %v231 = vld [vmem:[%s5 + $0x28] sm:$0xff]
    %v232 = vld [vmem:[%s5 + $0x30] sm:$0xff]
    %v233 = vld [vmem:[%s5 + $0x38] sm:$0xff]
    %v234 = vld [vmem:[%s5 + $0x40] sm:$0xff]
    %v235 = vld [vmem:[%s5 + $0x48] sm:$0xff]
    %v236 = vld [vmem:[%s5 + $0x50] sm:$0xff]
    %v237 = vld [vmem:[%s5 + $0x58] sm:$0xff]
    %v238 = vld [vmem:[%s5 + $0x60] sm:$0xff]
    %v239 = vld [vmem:[%s5 + $0x68] sm:$0xff]
    %v240 = vld [vmem:[%s5 + $0x70] sm:$0xff]
    %v241 = vld [vmem:[%s5 + $0x78] sm:$0xff]
    %v242 = vld [vmem:[%s6] sm:$0x1]
    %v244 = vlaneseq
    %v245 = vshrl.u32 %v244, 7
    %v246 = vsub.s32 0, %v245
    %v247 = vrot.slane %v242, %v246
    %249 = vmatprep.subr.mxu0 0.0
    %250 = vmatpush1.msra.mxu0 %v241
    %251 = vmatprep.subr.mxu0 0.0
    %252 = vmatpush1.msra.mxu0 %v240
    %253 = vmatprep.subr.mxu0 0.0
    %254 = vmatpush1.msra.mxu0 %v239
    %255 = vmatprep.subr.mxu0 0.0
    %256 = vmatpush1.msra.mxu0 %v238
    %257 = vmatprep.subr.mxu0 0.0
    %258 = vmatpush1.msra.mxu0 %v237
    %259 = vmatprep.subr.mxu0 0.0
    %260 = vmatpush1.msra.mxu0 %v236
    %261 = vmatprep.subr.mxu0 0.0
    %262 = vmatpush1.msra.mxu0 %v235
    %263 = vmatprep.subr.mxu0 0.0
    %264 = vmatpush1.msra.mxu0 %v234
    %265 = vmatprep.subr.mxu0 0.0
    %266 = vmatpush1.msra.mxu0 %v233
    %267 = vmatprep.subr.mxu0 0.0
    %268 = vmatpush1.msra.mxu0 %v232
    %269 = vmatprep.subr.mxu0 0.0
    %270 = vmatpush1.msra.mxu0 %v231
    %271 = vmatprep.subr.mxu0 0.0
    %272 = vmatpush1.msra.mxu0 %v230
    %273 = vmatprep.subr.mxu0 0.0
    %274 = vmatpush1.msra.mxu0 %v229
    %275 = vmatprep.subr.mxu0 0.0
    %276 = vmatpush1.msra.mxu0 %v228
    %277 = vmatprep.subr.mxu0 0.0
    %278 = vmatpush1.msra.mxu0 %v227
    %279 = vmatprep.subr.mxu0 0.0
    %280 = vmatpush1.msra.mxu0 %v226
    %281 = vmatprep.subr.mxu0 0.0
    %282 = vmatpush2.msra.mxu0 0.0
    %283 = vmatprep.subr.mxu0 0.0
    %284 = vmatpush2.msra.mxu0 0.0
    %285 = vmatprep.subr.mxu0 0.0
    %286 = vmatpush2.msra.mxu0 0.0
    %287 = vmatprep.subr.mxu0 0.0
    %288 = vmatpush2.msra.mxu0 0.0
    %289 = vmatprep.subr.mxu0 0.0
    %290 = vmatpush2.msra.mxu0 0.0
    %291 = vmatprep.subr.mxu0 0.0
    %292 = vmatpush2.msra.mxu0 0.0
    %293 = vmatprep.subr.mxu0 0.0
    %294 = vmatpush2.msra.mxu0 0.0
    %295 = vmatprep.subr.mxu0 0.0
    %296 = vmatpush2.msra.mxu0 0.0
    %297 = vmatprep.subr.mxu0 0.0
    %298 = vmatpush2.msra.mxu0 0.0
    %299 = vmatprep.subr.mxu0 0.0
    %300 = vmatpush2.msra.mxu0 0.0
    %301 = vmatprep.subr.mxu0 0.0
    %302 = vmatpush2.msra.mxu0 0.0
    %303 = vmatprep.subr.mxu0 0.0
    %304 = vmatpush2.msra.mxu0 0.0
    %305 = vmatprep.subr.mxu0 0.0
    %306 = vmatpush2.msra.mxu0 0.0
    %307 = vmatprep.subr.mxu0 0.0
    %308 = vmatpush2.msra.mxu0 0.0
    %309 = vmatprep.subr.mxu0 0.0
    %310 = vmatpush2.msra.mxu0 0.0
    %311 = vmatprep.subr.mxu0 0.0
    %312 = vmatpush2.msra.mxu0 0.0
    %313 = vmatprep.mubr.f32.mxu0 0.0
    %314 = vmatmul.mubr.f32.gmra.mxu0 %v225
    %v315 = vpop.f32.mrf.mxu0
    %v316 = vadd.f32 %v247, %v315
    %v317 = vpop.f32.mrf.mxu0
    %318 = vdwg.mxu0
    %vm319 = vcmask 58368
    %320 = vst.msk [vmem:[#allocation5] sm:$0x3] %vm319, %v316
    // Predicated region
    $region34: #{behavioral_net_forward.1} parent=1 // pred_check
      _
    $region35: #{behavioral_net_forward.1} parent=1 // pred_check_branch
      %322 = sbr.rel (0) target = $region37
    $region36: #{behavioral_net_forward.1} parent=1 // pred_region
      %s324 = ssub.s32 32, 32
      %325 = vsyncadd [#allocation4], %s324
      %s327 = sshll.u32 [#allocation5], 4
      %s328 = int_to_ptr.vmem [resolvable:$true] %s327
      %330 = dma.vmem_to_hbm [thread:$0]  %s328, 32, %s7, [#allocation4]
    $region37: #{behavioral_net_forward.1} parent=1 // pred_fallthru
      _
    // Predicated region
    $region38: #{behavioral_net_forward.1} parent=1 // pred_check
      _
    $region39: #{behavioral_net_forward.1} parent=1 // pred_check_branch
      %332 = sbr.rel (0) target = $region41
    $region40: #{behavioral_net_forward.1} parent=1 // pred_region
      %333 = dma.done [#allocation4], 32
    $region41: #{behavioral_net_forward.1} parent=1 // pred_fallthru
      _
    %334 = vsyncpa [#allocation3], 1
    %335 = vsyncpa [#allocation4], 1

</llo_original>
